<compile_context>
chip_gen: v6e
topology: v6e:2x2x1
jax: 0.10.0
libtpu: 0.0.40
codegen_flags: <defaults>
</compile_context>

<pallas_src>
import math
import functools

import jax
import jax.numpy as jnp
from jax.experimental import pallas as pl
from jax.experimental.pallas import tpu as pltpu


def _char_encoder_kernel(x_ref, w_ref, b_ref, out_ref, *, batch, seq, hidden):
    # x_ref:   (B*S, H)  embedded tokens + positional encoding (whole batch)
    # w_ref:   (H, 3H)   fused [Wq | Wk | Wv] projection weights
    # b_ref:   (1, 3H)   fused [bq | bk | bv] biases
    # out_ref: (B, H)    per-batch sum over sequence of attention output
    xe = x_ref[...]                                                   # (B*S, H)

    # Fused Q/K/V projection: one MXU pass over (B*S, H) @ (H, 3H).
    qkv = jnp.dot(xe, w_ref[...],
                  preferred_element_type=jnp.float32) + b_ref[...]   # (B*S, 3H)

    q = qkv[:, 0 * hidden:1 * hidden].reshape(batch, seq, hidden)
    k = qkv[:, 1 * hidden:2 * hidden].reshape(batch, seq, hidden)
    v = qkv[:, 2 * hidden:3 * hidden].reshape(batch, seq, hidden)

    # scores = Q @ K^T as a last-dim contraction (no explicit transpose),
    # softmax over the last dim (no 1/sqrt(d) scaling, matching the reference).
    scores = jnp.einsum('bqd,bkd->bqk', q, k,
                        preferred_element_type=jnp.float32)          # (B, S, S)
    scores = scores - jnp.max(scores, axis=-1, keepdims=True)
    p = jnp.exp(scores)
    p = p * pl.reciprocal(jnp.sum(p, axis=-1, keepdims=True), approx=False)

    we = jnp.einsum('bqk,bkd->bqd', p, v,
                    preferred_element_type=jnp.float32)              # (B, S, H)

    # torch.sum(word_embedding, dim=1) -> sum over sequence axis.
    out_ref[...] = jnp.sum(we, axis=1)                                # (B, H)


def get_positional_encoding(max_seq_len: int, embedding_dim: int) -> jnp.ndarray:
    # NOTE: like the PyTorch original, this requires embedding_dim to be even.
    assert embedding_dim % 2 == 0, "embedding_dim must be even"
    pe = [[0.0] * embedding_dim for _ in range(max_seq_len)]
    for pos in range(max_seq_len):
        for i in range(0, embedding_dim, 2):
            pe[pos][i] = math.sin(pos / 10000 ** (i / embedding_dim))
            pe[pos][i + 1] = math.cos(pos / 10000 ** ((i + 1) / embedding_dim))
    return jnp.asarray(pe, dtype=jnp.float32)


@jax.jit
def character_encoder_forward(tokens, params):
    """tokens: [B, S] int32.  Returns [B, H] float32."""
    emb_table = params["embedding"]          # [V, H]
    pos_full = params["pos"]                 # [max_seq_len, H]
    B, S = tokens.shape
    H = emb_table.shape[1]

    # Glue outside the kernel (no clean Pallas equivalent for the tiny gather):
    #   embedding lookup + positional add, then flatten to (B*S, H) so the
    #   fused projection is a single well-filled matmul inside the kernel.
    x_emb = jnp.take(emb_table, tokens, axis=0).astype(jnp.float32)   # [B, S, H]
    x_emb = x_emb + pos_full[:S, :][None, :, :]                       # fold pos add
    x_flat = x_emb.reshape(B * S, H)                                  # [B*S, H]

    # Fuse the three projection weights/biases into one tile.
    w_qkv = jnp.concatenate([params["wq"], params["wk"], params["wv"]], axis=1)  # [H, 3H]
    b_qkv = jnp.concatenate([params["bq"], params["bk"], params["bv"]], axis=1)  # [1, 3H]

    kernel = functools.partial(_char_encoder_kernel, batch=B, seq=S, hidden=H)

    # Single grid step: the whole (tiny) problem lives in VMEM at once.
    # TODO(synk): on v7x (2 TCs) a 2-wide "parallel" batch-split grid could use
    # the second core; at B=2/S=8/H=32 the per-step overhead outweighs it.
    grid_spec = pltpu.PrefetchScalarGridSpec(
        num_scalar_prefetch=0,
        grid=(1,),
        in_specs=[
            pl.BlockSpec((B * S, H), lambda b: (b, 0)),    # x (whole batch)
            pl.BlockSpec((H, 3 * H), lambda b: (0, 0)),    # fused Wqkv
            pl.BlockSpec((1, 3 * H), lambda b: (0, 0)),    # fused bqkv
        ],
        out_specs=pl.BlockSpec((B, H), lambda b: (b, 0)),  # one (B, H) store
    )

    out = pl.pallas_call(
        kernel,
        out_shape=jax.ShapeDtypeStruct((B, H), jnp.float32),
        grid_spec=grid_spec,
        compiler_params=pltpu.CompilerParams(
            dimension_semantics=("parallel",)),
    )(x_flat, w_qkv, b_qkv)
    return out


def init_params(key, vocab_size, hidden_size, max_seq_len):
    ks = jax.random.split(key, 7)
    scale = 1.0 / math.sqrt(hidden_size)
    params = {
        "embedding": jax.random.normal(ks[0], (vocab_size, hidden_size), jnp.float32),
        # weights stored [in, out]; equivalent to nn.Linear with W = wq.T
        "wq": jax.random.uniform(ks[1], (hidden_size, hidden_size), jnp.float32, -scale, scale),
        "bq": jax.random.uniform(ks[2], (1, hidden_size), jnp.float32, -scale, scale),
        "wk": jax.random.uniform(ks[3], (hidden_size, hidden_size), jnp.float32, -scale, scale),
        "bk": jax.random.uniform(ks[4], (1, hidden_size), jnp.float32, -scale, scale),
        "wv": jax.random.uniform(ks[5], (hidden_size, hidden_size), jnp.float32, -scale, scale),
        "bv": jax.random.uniform(ks[6], (1, hidden_size), jnp.float32, -scale, scale),
        "pos": get_positional_encoding(max_seq_len, hidden_size),
    }
    return params


def reference_forward(tokens, params):
    """Pure-JAX reference mirroring the PyTorch module exactly."""
    x = jnp.take(params["embedding"], tokens, axis=0)
    S = tokens.shape[1]
    x = x + params["pos"][:S, :]
    q = x @ params["wq"] + params["bq"][0]
    k = x @ params["wk"] + params["bk"][0]
    v = x @ params["wv"] + params["bv"][0]
    scores = jax.nn.softmax(q @ jnp.swapaxes(k, -2, -1), axis=-1)
    we = scores @ v
    return jnp.sum(we, axis=1)


if __name__ == "__main__":
    key = jax.random.PRNGKey(0)
    vocab_size = 16      # charset length
    hidden_size = 32
    max_seq_len = 25
    B, S = 2, 8

    pkey, tkey = jax.random.split(key)
    params = init_params(pkey, vocab_size, hidden_size, max_seq_len)
    tokens = jax.random.randint(tkey, (B, S), 0, vocab_size, dtype=jnp.int32)

    out = character_encoder_forward(tokens, params)
    out = jax.block_until_ready(out)

    ref = jax.block_until_ready(reference_forward(tokens, params))
    assert out.shape == (B, hidden_size)
    assert jnp.allclose(out, ref, atol=1e-4, rtol=1e-4), "mismatch vs reference"

    print("KERNEL_OK")
</pallas_src>

<mosaic_0001>
module attributes {stable_mosaic.version = 11 : i64} {
  func.func @_char_encoder_kernel(%arg0: i32, %arg1: memref<16x32xf32, #tpu.memory_space<vmem>>, %arg2: memref<32x96xf32, #tpu.memory_space<vmem>>, %arg3: memref<1x96xf32, #tpu.memory_space<vmem>>, %arg4: memref<2x32xf32, #tpu.memory_space<vmem>>) attributes {dimension_semantics = [#tpu.dimension_semantics<parallel>], iteration_bounds = array<i64: 1>, scalar_prefetch = 0 : i64, scratch_operands = 0 : i64, tpu.core_type = #tpu.core_type<tc>, window_params = [{transform_indices = @transform_0, window_bounds = array<i64: 16, 32>}, {pipeline_mode = #tpu.pipeline_mode<synchronous>, transform_indices = @transform_1, window_bounds = array<i64: 32, 96>}, {pipeline_mode = #tpu.pipeline_mode<synchronous>, transform_indices = @transform_2, window_bounds = array<i64: 1, 96>}, {transform_indices = @transform_3, window_bounds = array<i64: 2, 32>}]} {
    %c0 = arith.constant 0 : index
    %c0_0 = arith.constant 0 : index
    %0 = vector.load %arg1[%c0, %c0_0] : memref<16x32xf32, #tpu.memory_space<vmem>>, vector<16x32xf32>
    %c0_1 = arith.constant 0 : index
    %c0_2 = arith.constant 0 : index
    %1 = vector.load %arg2[%c0_1, %c0_2] : memref<32x96xf32, #tpu.memory_space<vmem>>, vector<32x96xf32>
    %cst = arith.constant dense<0.000000e+00> : vector<16x96xf32>
    %2 = tpu.matmul %0, %1, %cst {dimension_numbers = #tpu.dot_dimension_numbers<[1], [0], [0], [1], [0, 0, 1, 1], [], []>} : vector<16x32xf32>, vector<32x96xf32>, vector<16x96xf32> -> vector<16x96xf32>
    %c0_3 = arith.constant 0 : index
    %c0_4 = arith.constant 0 : index
    %3 = vector.load %arg3[%c0_3, %c0_4] : memref<1x96xf32, #tpu.memory_space<vmem>>, vector<1x96xf32>
    %4 = vector.broadcast %3 : vector<1x96xf32> to vector<16x96xf32>
    %5 = arith.addf %2, %4 : vector<16x96xf32>
    %6 = vector.extract_strided_slice %5 {offsets = [0, 0], sizes = [16, 32], strides = [1, 1]} : vector<16x96xf32> to vector<16x32xf32>
    %7 = vector.shape_cast %6 : vector<16x32xf32> to vector<2x8x32xf32>
    %8 = vector.extract_strided_slice %5 {offsets = [0, 32], sizes = [16, 32], strides = [1, 1]} : vector<16x96xf32> to vector<16x32xf32>
    %9 = vector.shape_cast %8 : vector<16x32xf32> to vector<2x8x32xf32>
    %10 = vector.extract_strided_slice %5 {offsets = [0, 64], sizes = [16, 32], strides = [1, 1]} : vector<16x96xf32> to vector<16x32xf32>
    %11 = vector.shape_cast %10 : vector<16x32xf32> to vector<2x8x32xf32>
    "tpu.trace_start"() <{level = 10 : i32, message = "bqd,bkd->bqk"}> : () -> ()
    %cst_5 = arith.constant dense<0.000000e+00> : vector<2x8x8xf32>
    %12 = tpu.matmul %7, %9, %cst_5 {dimension_numbers = #tpu.dot_dimension_numbers<[2], [2], [1], [1], [0, 0, 0, 1, 1, 1], [0], [0]>} : vector<2x8x32xf32>, vector<2x8x32xf32>, vector<2x8x8xf32> -> vector<2x8x8xf32>
    "tpu.trace_stop"() : () -> ()
    %cst_6 = arith.constant dense<0xFF800000> : vector<2x8xf32>
    %13 = vector.multi_reduction <maximumf>, %12, %cst_6 [2] : vector<2x8x8xf32> to vector<2x8xf32>
    %14 = vector.shape_cast %13 : vector<2x8xf32> to vector<2x8x1xf32>
    %15 = vector.broadcast %14 : vector<2x8x1xf32> to vector<2x8x8xf32>
    %16 = arith.subf %12, %15 : vector<2x8x8xf32>
    %17 = math.exp %16 : vector<2x8x8xf32>
    %cst_7 = arith.constant dense<0.000000e+00> : vector<2x8xf32>
    %18 = vector.multi_reduction <add>, %17, %cst_7 [2] : vector<2x8x8xf32> to vector<2x8xf32>
    %19 = vector.shape_cast %18 : vector<2x8xf32> to vector<2x8x1xf32>
    %20 = tpu.reciprocal %19 : vector<2x8x1xf32> -> vector<2x8x1xf32>
    %21 = vector.broadcast %20 : vector<2x8x1xf32> to vector<2x8x8xf32>
    %22 = arith.mulf %17, %21 : vector<2x8x8xf32>
    "tpu.trace_start"() <{level = 10 : i32, message = "bqk,bkd->bqd"}> : () -> ()
    %cst_8 = arith.constant dense<0.000000e+00> : vector<2x8x32xf32>
    %23 = tpu.matmul %22, %11, %cst_8 {dimension_numbers = #tpu.dot_dimension_numbers<[2], [1], [1], [2], [0, 0, 0, 1, 1, 2], [0], [0]>} : vector<2x8x8xf32>, vector<2x8x32xf32>, vector<2x8x32xf32> -> vector<2x8x32xf32>
    "tpu.trace_stop"() : () -> ()
    %cst_9 = arith.constant dense<0.000000e+00> : vector<2x32xf32>
    %24 = vector.multi_reduction <add>, %23, %cst_9 [1] : vector<2x8x32xf32> to vector<2x32xf32>
    %c0_10 = arith.constant 0 : index
    %c0_11 = arith.constant 0 : index
    %25 = vector.load %arg4[%c0_10, %c0_11] : memref<2x32xf32, #tpu.memory_space<vmem>>, vector<2x32xf32>
    tpu.vector_store %arg4[%c0_10, %c0_11], %24 {strides = array<i32>} : memref<2x32xf32, #tpu.memory_space<vmem>>, vector<2x32xf32>,
    return
  }
  func.func @transform_0(%arg0: i32) -> (i32, i32) {
    %c0_i32 = arith.constant 0 : i32
    %c0_i32_0 = arith.constant 0 : i32
    return %arg0, %c0_i32 : i32, i32
  }
  func.func @transform_1(%arg0: i32) -> (i32, i32) {
    %c0_i32 = arith.constant 0 : i32
    %c0_i32_0 = arith.constant 0 : i32
    %c0_i32_1 = arith.constant 0 : i32
    return %c0_i32, %c0_i32_0 : i32, i32
  }
  func.func @transform_2(%arg0: i32) -> (i32, i32) {
    %c0_i32 = arith.constant 0 : i32
    %c0_i32_0 = arith.constant 0 : i32
    %c0_i32_1 = arith.constant 0 : i32
    return %c0_i32, %c0_i32_0 : i32, i32
  }
  func.func @transform_3(%arg0: i32) -> (i32, i32) {
    %c0_i32 = arith.constant 0 : i32
    %c0_i32_0 = arith.constant 0 : i32
    return %arg0, %c0_i32 : i32, i32
  }
}

</mosaic_0001>

<llo_original>
// kernel: character_encoder_forward.1
$region0: #{character_encoder_forward.1}
  #allocation0 [shape = 'u32[]', space=smem, size = 0x4, offset = 0x4, fixed_abs, tag = 'smem constant byte address 0x4 - core index']
  #allocation1 [shape = 'u32[144,128]{1,0:T(1,128)}', space=vmem, size = 0x12000, scoped, tag = 'internal scratch']
  %s0 = inlined_call_operand.vmem [shape: f32[16,32], index: 0, kind: input, shape index: {}]
  %s1 = inlined_call_operand.vmem [shape: f32[32,96], index: 1, kind: input, shape index: {}]
  %s2 = inlined_call_operand.vmem [shape: f32[1,96], index: 2, kind: input, shape index: {}]
  %s3 = inlined_call_operand.hbm [shape: f32[2,32], index: 3, kind: output, shape index: {}]
  %s4 = sld [smem:[#allocation0]]
  $region22: #{character_encoder_forward.1} parent=0
    _
  %s6 = ssub.s32 1, %s4
  %s7 = scalar_select 0, %s6, %s4
  $region1: #{character_encoder_forward.1} parent=0
    #allocation2 [shape = 'u8[1024]{0}', space=vmem, size = 0x400, scoped, tag = 'output window, operand 0, single buffered']
    #allocation3 [shape = 's32[1]{0}', space=sflag, size = 0x4, scoped, tag = 'scoped memory for character_encoder_forward.1']
    %8 = vsyncpa [#allocation3], 0
    // Predicated region
    $region2: #{character_encoder_forward.1} parent=1 // pred_check
      _
    $region3: #{character_encoder_forward.1} parent=1 // pred_check_branch
      %10 = sbr.rel (0) target = $region5
    $region4: #{character_encoder_forward.1} parent=1 // pred_region
      _
    $region5: #{character_encoder_forward.1} parent=1 // pred_fallthru
      _
    // Predicated region
    $region6: #{character_encoder_forward.1} parent=1 // pred_check
      _
    $region7: #{character_encoder_forward.1} parent=1 // pred_check_branch
      %12 = sbr.rel (0) target = $region9
    $region8: #{character_encoder_forward.1} parent=1 // pred_region
      _
    $region9: #{character_encoder_forward.1} parent=1 // pred_fallthru
      _
    // Predicated region
    $region10: #{character_encoder_forward.1} parent=1 // pred_check
      _
    $region11: #{character_encoder_forward.1} parent=1 // pred_check_branch
      %14 = sbr.rel (0) target = $region13
    $region12: #{character_encoder_forward.1} parent=1 // pred_region
      _
    $region13: #{character_encoder_forward.1} parent=1 // pred_fallthru
      _
    %v15 = vld [vmem:[%s0] sm:$0xff]
    %v16 = vld [vmem:[%s0 + $0x8] sm:$0xff]
    %v17 = vld [vmem:[%s1] sm:$0xff]
    %v18 = vld [vmem:[%s1 + $0x8] sm:$0xff]
    %v19 = vld [vmem:[%s1 + $0x10] sm:$0xff]
    %v20 = vld [vmem:[%s1 + $0x18] sm:$0xff]
    %v21 = vld [vmem:[%s2] sm:$0x1]
    %v23 = vlaneseq
    %v24 = vshrl.u32 %v23, 7
    %v25 = vsub.s32 0, %v24
    %v26 = vrot.slane %v21, %v25
    %vm28 = vcmask 261120
    %v30 = vsel %vm28, %v15, 0
    %v33 = vsel %vm28, %v16, 0
    %35 = vmatprep.subr.mxu0 0.0
    %36 = vmatpush1.msra.mxu0 0.0
    %37 = vmatprep.subr.mxu0 0.0
    %38 = vmatpush1.msra.mxu0 0.0
    %39 = vmatprep.subr.mxu0 0.0
    %40 = vmatpush1.msra.mxu0 0.0
    %41 = vmatprep.subr.mxu0 0.0
    %42 = vmatpush1.msra.mxu0 0.0
    %43 = vmatprep.subr.mxu0 0.0
    %44 = vmatpush1.msra.mxu0 0.0
    %45 = vmatprep.subr.mxu0 0.0
    %46 = vmatpush1.msra.mxu0 0.0
    %47 = vmatprep.subr.mxu0 0.0
    %48 = vmatpush1.msra.mxu0 0.0
    %49 = vmatprep.subr.mxu0 0.0
    %50 = vmatpush1.msra.mxu0 0.0
    %51 = vmatprep.subr.mxu0 0.0
    %52 = vmatpush1.msra.mxu0 0.0
    %53 = vmatprep.subr.mxu0 0.0
    %54 = vmatpush1.msra.mxu0 0.0
    %55 = vmatprep.subr.mxu0 0.0
    %56 = vmatpush1.msra.mxu0 0.0
    %57 = vmatprep.subr.mxu0 0.0
    %58 = vmatpush1.msra.mxu0 0.0
    %59 = vmatprep.subr.mxu0 0.0
    %60 = vmatpush1.msra.mxu0 %v20
    %61 = vmatprep.subr.mxu0 0.0
    %62 = vmatpush1.msra.mxu0 %v19
    %63 = vmatprep.subr.mxu0 0.0
    %64 = vmatpush1.msra.mxu0 %v18
    %65 = vmatprep.subr.mxu0 0.0
    %66 = vmatpush1.msra.mxu0 %v17
    %67 = vmatprep.subr.mxu0 0.0
    %68 = vmatpush2.msra.mxu0 0.0
    %69 = vmatprep.subr.mxu0 0.0
    %70 = vmatpush2.msra.mxu0 0.0
    %71 = vmatprep.subr.mxu0 0.0
    %72 = vmatpush2.msra.mxu0 0.0
    %73 = vmatprep.subr.mxu0 0.0
    %74 = vmatpush2.msra.mxu0 0.0
    %75 = vmatprep.subr.mxu0 0.0
    %76 = vmatpush2.msra.mxu0 0.0
    %77 = vmatprep.subr.mxu0 0.0
    %78 = vmatpush2.msra.mxu0 0.0
    %79 = vmatprep.subr.mxu0 0.0
    %80 = vmatpush2.msra.mxu0 0.0
    %81 = vmatprep.subr.mxu0 0.0
    %82 = vmatpush2.msra.mxu0 0.0
    %83 = vmatprep.subr.mxu0 0.0
    %84 = vmatpush2.msra.mxu0 0.0
    %85 = vmatprep.subr.mxu0 0.0
    %86 = vmatpush2.msra.mxu0 0.0
    %87 = vmatprep.subr.mxu0 0.0
    %88 = vmatpush2.msra.mxu0 0.0
    %89 = vmatprep.subr.mxu0 0.0
    %90 = vmatpush2.msra.mxu0 0.0
    %91 = vmatprep.subr.mxu0 0.0
    %92 = vmatpush2.msra.mxu0 0.0
    %93 = vmatprep.subr.mxu0 0.0
    %94 = vmatpush2.msra.mxu0 0.0
    %95 = vmatprep.subr.mxu0 0.0
    %96 = vmatpush2.msra.mxu0 0.0
    %97 = vmatprep.subr.mxu0 0.0
    %98 = vmatpush2.msra.mxu0 0.0
    %99 = vmatprep.mubr.f32.mxu0 0.0
    %100 = vmatmul.mubr.f32.gmra.mxu0 %v30
    %v101 = vpop.f32.mrf.mxu0
    %v102 = vadd.f32 %v26, %v101
    %v103 = vpop.f32.mrf.mxu0
    %104 = vmatprep.mubr.f32.mxu0 0.0
    %105 = vmatmul.mubr.f32.gmra.mxu0 %v33
    %v106 = vpop.f32.mrf.mxu0
    %v107 = vadd.f32 %v26, %v106
    %v108 = vpop.f32.mrf.mxu0
    %109 = vdwg.mxu0
    %111 = vrot.lane.b32.xlu0 %v102, 96
    %v112 = vpop.permute.xlu0 %111
    %v113 = vsel %vm28, %v102, 0
    %v115 = vsel %vm28, %v112, 0
    %117 = vmatprep.subr.mxu0 0.0
    %118 = vmatpush1.xpose.msra.mxu0 0.0
    %119 = vmatprep.subr.mxu0 0.0
    %120 = vmatpush1.xpose.msra.mxu0 0.0
    %121 = vmatprep.subr.mxu0 0.0
    %122 = vmatpush1.xpose.msra.mxu0 0.0
    %123 = vmatprep.subr.mxu0 0.0
    %124 = vmatpush1.xpose.msra.mxu0 0.0
    %125 = vmatprep.subr.mxu0 0.0
    %126 = vmatpush1.xpose.msra.mxu0 0.0
    %127 = vmatprep.subr.mxu0 0.0
    %128 = vmatpush1.xpose.msra.mxu0 0.0
    %129 = vmatprep.subr.mxu0 0.0
    %130 = vmatpush1.xpose.msra.mxu0 0.0
    %131 = vmatprep.subr.mxu0 0.0
    %132 = vmatpush1.xpose.msra.mxu0 0.0
    %133 = vmatprep.subr.mxu0 0.0
    %134 = vmatpush1.xpose.msra.mxu0 0.0
    %135 = vmatprep.subr.mxu0 0.0
    %136 = vmatpush1.xpose.msra.mxu0 0.0
    %137 = vmatprep.subr.mxu0 0.0
    %138 = vmatpush1.xpose.msra.mxu0 0.0
    %139 = vmatprep.subr.mxu0 0.0
    %140 = vmatpush1.xpose.msra.mxu0 0.0
    %141 = vmatprep.subr.mxu0 0.0
    %142 = vmatpush1.xpose.msra.mxu0 0.0
    %143 = vmatprep.subr.mxu0 0.0
    %144 = vmatpush1.xpose.msra.mxu0 0.0
    %145 = vmatprep.subr.mxu0 0.0
    %146 = vmatpush1.xpose.msra.mxu0 0.0
    %147 = vmatprep.subr.mxu0 0.0
    %148 = vmatpush1.xpose.msra.mxu0 %v115
    %149 = vmatprep.subr.mxu0 0.0
    %150 = vmatpush2.xpose.msra.mxu0 0.0
    %151 = vmatprep.subr.mxu0 0.0
    %152 = vmatpush2.xpose.msra.mxu0 0.0
    %153 = vmatprep.subr.mxu0 0.0
    %154 = vmatpush2.xpose.msra.mxu0 0.0
    %155 = vmatprep.subr.mxu0 0.0
    %156 = vmatpush2.xpose.msra.mxu0 0.0
    %157 = vmatprep.subr.mxu0 0.0
    %158 = vmatpush2.xpose.msra.mxu0 0.0
    %159 = vmatprep.subr.mxu0 0.0
    %160 = vmatpush2.xpose.msra.mxu0 0.0
    %161 = vmatprep.subr.mxu0 0.0
    %162 = vmatpush2.xpose.msra.mxu0 0.0
    %163 = vmatprep.subr.mxu0 0.0
    %164 = vmatpush2.xpose.msra.mxu0 0.0
    %165 = vmatprep.subr.mxu0 0.0
    %166 = vmatpush2.xpose.msra.mxu0 0.0
    %167 = vmatprep.subr.mxu0 0.0
    %168 = vmatpush2.xpose.msra.mxu0 0.0
    %169 = vmatprep.subr.mxu0 0.0
    %170 = vmatpush2.xpose.msra.mxu0 0.0
    %171 = vmatprep.subr.mxu0 0.0
    %172 = vmatpush2.xpose.msra.mxu0 0.0
    %173 = vmatprep.subr.mxu0 0.0
    %174 = vmatpush2.xpose.msra.mxu0 0.0
    %175 = vmatprep.subr.mxu0 0.0
    %176 = vmatpush2.xpose.msra.mxu0 0.0
    %177 = vmatprep.subr.mxu0 0.0
    %178 = vmatpush2.xpose.msra.mxu0 0.0
    %179 = vmatprep.subr.mxu0 0.0
    %180 = vmatpush2.xpose.msra.mxu0 0.0
    %181 = vmatprep.mubr.f32.mxu0 0.0
    %182 = vmatmul.mubr.f32.gmra.mxu0 %v113
    %v183 = vpop.f32.mrf.mxu0
    %v184 = vadd.f32 0.0, %v183
    %v185 = vpop.f32.mrf.mxu0
    %186 = vdwg.mxu0
    %188 = vrot.lane.b32.xlu0 %v107, 96
    %v189 = vpop.permute.xlu0 %188
    %v190 = vsel %vm28, %v107, 0
    %v192 = vsel %vm28, %v189, 0
    %194 = vmatprep.subr.mxu0 0.0
    %195 = vmatpush1.xpose.msra.mxu0 0.0
    %196 = vmatprep.subr.mxu0 0.0
    %197 = vmatpush1.xpose.msra.mxu0 0.0
    %198 = vmatprep.subr.mxu0 0.0
    %199 = vmatpush1.xpose.msra.mxu0 0.0
    %200 = vmatprep.subr.mxu0 0.0
    %201 = vmatpush1.xpose.msra.mxu0 0.0
    %202 = vmatprep.subr.mxu0 0.0
    %203 = vmatpush1.xpose.msra.mxu0 0.0
    %204 = vmatprep.subr.mxu0 0.0
    %205 = vmatpush1.xpose.msra.mxu0 0.0
    %206 = vmatprep.subr.mxu0 0.0
    %207 = vmatpush1.xpose.msra.mxu0 0.0
    %208 = vmatprep.subr.mxu0 0.0
    %209 = vmatpush1.xpose.msra.mxu0 0.0
    %210 = vmatprep.subr.mxu0 0.0
    %211 = vmatpush1.xpose.msra.mxu0 0.0
    %212 = vmatprep.subr.mxu0 0.0
    %213 = vmatpush1.xpose.msra.mxu0 0.0
    %214 = vmatprep.subr.mxu0 0.0
    %215 = vmatpush1.xpose.msra.mxu0 0.0
    %216 = vmatprep.subr.mxu0 0.0
    %217 = vmatpush1.xpose.msra.mxu0 0.0
    %218 = vmatprep.subr.mxu0 0.0
    %219 = vmatpush1.xpose.msra.mxu0 0.0
    %220 = vmatprep.subr.mxu0 0.0
    %221 = vmatpush1.xpose.msra.mxu0 0.0
    %222 = vmatprep.subr.mxu0 0.0
    %223 = vmatpush1.xpose.msra.mxu0 0.0
    %224 = vmatprep.subr.mxu0 0.0
    %225 = vmatpush1.xpose.msra.mxu0 %v192
    %226 = vmatprep.subr.mxu0 0.0
    %227 = vmatpush2.xpose.msra.mxu0 0.0
    %228 = vmatprep.subr.mxu0 0.0
    %229 = vmatpush2.xpose.msra.mxu0 0.0
    %230 = vmatprep.subr.mxu0 0.0
    %231 = vmatpush2.xpose.msra.mxu0 0.0
    %232 = vmatprep.subr.mxu0 0.0
    %233 = vmatpush2.xpose.msra.mxu0 0.0
    %234 = vmatprep.subr.mxu0 0.0
    %235 = vmatpush2.xpose.msra.mxu0 0.0
    %236 = vmatprep.subr.mxu0 0.0
    %237 = vmatpush2.xpose.msra.mxu0 0.0
    %238 = vmatprep.subr.mxu0 0.0
    %239 = vmatpush2.xpose.msra.mxu0 0.0
    %240 = vmatprep.subr.mxu0 0.0
    %241 = vmatpush2.xpose.msra.mxu0 0.0
    %242 = vmatprep.subr.mxu0 0.0
    %243 = vmatpush2.xpose.msra.mxu0 0.0
    %244 = vmatprep.subr.mxu0 0.0
    %245 = vmatpush2.xpose.msra.mxu0 0.0
    %246 = vmatprep.subr.mxu0 0.0
    %247 = vmatpush2.xpose.msra.mxu0 0.0
    %248 = vmatprep.subr.mxu0 0.0
    %249 = vmatpush2.xpose.msra.mxu0 0.0
    %250 = vmatprep.subr.mxu0 0.0
    %251 = vmatpush2.xpose.msra.mxu0 0.0
    %252 = vmatprep.subr.mxu0 0.0
    %253 = vmatpush2.xpose.msra.mxu0 0.0
    %254 = vmatprep.subr.mxu0 0.0
    %255 = vmatpush2.xpose.msra.mxu0 0.0
    %256 = vmatprep.subr.mxu0 0.0
    %257 = vmatpush2.xpose.msra.mxu0 0.0
    %258 = vmatprep.mubr.f32.mxu0 0.0
    %259 = vmatmul.mubr.f32.gmra.mxu0 %v190
    %v260 = vpop.f32.mrf.mxu0
    %v261 = vadd.f32 0.0, %v260
    %v262 = vpop.f32.mrf.mxu0
    %263 = vdwg.mxu0
    %vm264 = vcmask 64512
    %v265 = vsel %vm264, %v184, -inf
    %266 = vmax.xlane.f32.xlu0 %v265
    %v267 = vpop.xlane.xlu0 %266
    %v268 = vsel %vm264, %v261, -inf
    %269 = vmax.xlane.f32.xlu0 %v268
    %v270 = vpop.xlane.xlu0 %269
    %v271 = vsub.f32 %v184, %v267
    %v272 = vsub.f32 %v261, %v270
    %v273 = vmul.f32 %v271, 1.442695
    %v274 = vpow.pop %v273
    %v275 = vmul.f32 %v272, 1.442695
    %v276 = vpow.pop %v275
    %v277 = vsel %vm264, %v274, 0.0
    %278 = vadd.xlane.f32.xlu0 %v277
    %v279 = vpop.xlane.xlu0 %278
    %v280 = vsel %vm264, %v276, 0.0
    %281 = vadd.xlane.f32.xlu0 %v280
    %v282 = vpop.xlane.xlu0 %281
    %v283 = vrcp.pop %v279
    %v284 = vrcp.pop %v282
    %v285 = vmul.f32 %v274, %v283
    %v286 = vmul.f32 %v276, %v284
    %287 = vrot.lane.b32.xlu0 %v102, 64
    %v288 = vpop.permute.xlu0 %287
    %v291 = vsel %vm264, %v285, 0
    %293 = vmatprep.subr.mxu0 0.0
    %294 = vmatpush1.msra.mxu0 0.0
    %295 = vmatprep.subr.mxu0 0.0
    %296 = vmatpush1.msra.mxu0 0.0
    %297 = vmatprep.subr.mxu0 0.0
    %298 = vmatpush1.msra.mxu0 0.0
    %299 = vmatprep.subr.mxu0 0.0
    %300 = vmatpush1.msra.mxu0 0.0
    %301 = vmatprep.subr.mxu0 0.0
    %302 = vmatpush1.msra.mxu0 0.0
    %303 = vmatprep.subr.mxu0 0.0
    %304 = vmatpush1.msra.mxu0 0.0
    %305 = vmatprep.subr.mxu0 0.0
    %306 = vmatpush1.msra.mxu0 0.0
    %307 = vmatprep.subr.mxu0 0.0
    %308 = vmatpush1.msra.mxu0 0.0
    %309 = vmatprep.subr.mxu0 0.0
    %310 = vmatpush1.msra.mxu0 0.0
    %311 = vmatprep.subr.mxu0 0.0
    %312 = vmatpush1.msra.mxu0 0.0
    %313 = vmatprep.subr.mxu0 0.0
    %314 = vmatpush1.msra.mxu0 0.0
    %315 = vmatprep.subr.mxu0 0.0
    %316 = vmatpush1.msra.mxu0 0.0
    %317 = vmatprep.subr.mxu0 0.0
    %318 = vmatpush1.msra.mxu0 0.0
    %319 = vmatprep.subr.mxu0 0.0
    %320 = vmatpush1.msra.mxu0 0.0
    %321 = vmatprep.subr.mxu0 0.0
    %322 = vmatpush1.msra.mxu0 0.0
    %323 = vmatprep.subr.mxu0 0.0
    %324 = vmatpush1.msra.mxu0 %v288
    %325 = vmatprep.subr.mxu0 0.0
    %326 = vmatpush2.msra.mxu0 0.0
    %327 = vmatprep.subr.mxu0 0.0
    %328 = vmatpush2.msra.mxu0 0.0
    %329 = vmatprep.subr.mxu0 0.0
    %330 = vmatpush2.msra.mxu0 0.0
    %331 = vmatprep.subr.mxu0 0.0
    %332 = vmatpush2.msra.mxu0 0.0
    %333 = vmatprep.subr.mxu0 0.0
    %334 = vmatpush2.msra.mxu0 0.0
    %335 = vmatprep.subr.mxu0 0.0
    %336 = vmatpush2.msra.mxu0 0.0
    %337 = vmatprep.subr.mxu0 0.0
    %338 = vmatpush2.msra.mxu0 0.0
    %339 = vmatprep.subr.mxu0 0.0
    %340 = vmatpush2.msra.mxu0 0.0
    %341 = vmatprep.subr.mxu0 0.0
    %342 = vmatpush2.msra.mxu0 0.0
    %343 = vmatprep.subr.mxu0 0.0
    %344 = vmatpush2.msra.mxu0 0.0
    %345 = vmatprep.subr.mxu0 0.0
    %346 = vmatpush2.msra.mxu0 0.0
    %347 = vmatprep.subr.mxu0 0.0
    %348 = vmatpush2.msra.mxu0 0.0
    %349 = vmatprep.subr.mxu0 0.0
    %350 = vmatpush2.msra.mxu0 0.0
    %351 = vmatprep.subr.mxu0 0.0
    %352 = vmatpush2.msra.mxu0 0.0
    %353 = vmatprep.subr.mxu0 0.0
    %354 = vmatpush2.msra.mxu0 0.0
    %355 = vmatprep.subr.mxu0 0.0
    %356 = vmatpush2.msra.mxu0 0.0
    %357 = vmatprep.mubr.f32.mxu0 0.0
    %358 = vmatmul.mubr.f32.gmra.mxu0 %v291
    %v359 = vpop.f32.mrf.mxu0
    %v360 = vadd.f32 0.0, %v359
    %v361 = vpop.f32.mrf.mxu0
    %362 = vdwg.mxu0
    %363 = vrot.lane.b32.xlu0 %v107, 64
    %v364 = vpop.permute.xlu0 %363
    %v367 = vsel %vm264, %v286, 0
    %369 = vmatprep.subr.mxu0 0.0
    %370 = vmatpush1.msra.mxu0 0.0
    %371 = vmatprep.subr.mxu0 0.0
    %372 = vmatpush1.msra.mxu0 0.0
    %373 = vmatprep.subr.mxu0 0.0
    %374 = vmatpush1.msra.mxu0 0.0
    %375 = vmatprep.subr.mxu0 0.0
    %376 = vmatpush1.msra.mxu0 0.0
    %377 = vmatprep.subr.mxu0 0.0
    %378 = vmatpush1.msra.mxu0 0.0
    %379 = vmatprep.subr.mxu0 0.0
    %380 = vmatpush1.msra.mxu0 0.0
    %381 = vmatprep.subr.mxu0 0.0
    %382 = vmatpush1.msra.mxu0 0.0
    %383 = vmatprep.subr.mxu0 0.0
    %384 = vmatpush1.msra.mxu0 0.0
    %385 = vmatprep.subr.mxu0 0.0
    %386 = vmatpush1.msra.mxu0 0.0
    %387 = vmatprep.subr.mxu0 0.0
    %388 = vmatpush1.msra.mxu0 0.0
    %389 = vmatprep.subr.mxu0 0.0
    %390 = vmatpush1.msra.mxu0 0.0
    %391 = vmatprep.subr.mxu0 0.0
    %392 = vmatpush1.msra.mxu0 0.0
    %393 = vmatprep.subr.mxu0 0.0
    %394 = vmatpush1.msra.mxu0 0.0
    %395 = vmatprep.subr.mxu0 0.0
    %396 = vmatpush1.msra.mxu0 0.0
    %397 = vmatprep.subr.mxu0 0.0
    %398 = vmatpush1.msra.mxu0 0.0
    %399 = vmatprep.subr.mxu0 0.0
    %400 = vmatpush1.msra.mxu0 %v364
    %401 = vmatprep.subr.mxu0 0.0
    %402 = vmatpush2.msra.mxu0 0.0
    %403 = vmatprep.subr.mxu0 0.0
    %404 = vmatpush2.msra.mxu0 0.0
    %405 = vmatprep.subr.mxu0 0.0
    %406 = vmatpush2.msra.mxu0 0.0
    %407 = vmatprep.subr.mxu0 0.0
    %408 = vmatpush2.msra.mxu0 0.0
    %409 = vmatprep.subr.mxu0 0.0
    %410 = vmatpush2.msra.mxu0 0.0
    %411 = vmatprep.subr.mxu0 0.0
    %412 = vmatpush2.msra.mxu0 0.0
    %413 = vmatprep.subr.mxu0 0.0
    %414 = vmatpush2.msra.mxu0 0.0
    %415 = vmatprep.subr.mxu0 0.0
    %416 = vmatpush2.msra.mxu0 0.0
    %417 = vmatprep.subr.mxu0 0.0
    %418 = vmatpush2.msra.mxu0 0.0
    %419 = vmatprep.subr.mxu0 0.0
    %420 = vmatpush2.msra.mxu0 0.0
    %421 = vmatprep.subr.mxu0 0.0
    %422 = vmatpush2.msra.mxu0 0.0
    %423 = vmatprep.subr.mxu0 0.0
    %424 = vmatpush2.msra.mxu0 0.0
    %425 = vmatprep.subr.mxu0 0.0
    %426 = vmatpush2.msra.mxu0 0.0
    %427 = vmatprep.subr.mxu0 0.0
    %428 = vmatpush2.msra.mxu0 0.0
    %429 = vmatprep.subr.mxu0 0.0
    %430 = vmatpush2.msra.mxu0 0.0
    %431 = vmatprep.subr.mxu0 0.0
    %432 = vmatpush2.msra.mxu0 0.0
    %433 = vmatprep.mubr.f32.mxu0 0.0
    %434 = vmatmul.mubr.f32.gmra.mxu0 %v367
    %v435 = vpop.f32.mrf.mxu0
    %v436 = vadd.f32 0.0, %v435
    %v437 = vpop.f32.mrf.mxu0
    %438 = vdwg.mxu0
    %v439 = vsel %vm28, %v360, 0.0
    %v440 = vrot.slane %v439, 4
    %v441 = vadd.f32 %v439, %v440
    %v442 = vrot.slane %v441, 2
    %v443 = vadd.f32 %v441, %v442
    %v444 = vrot.slane %v443, 1
    %v445 = vadd.f32 %v443, %v444
    %v446 = vsel %vm28, %v436, 0.0
    %v447 = vrot.slane %v446, 4
    %v448 = vadd.f32 %v446, %v447
    %v449 = vrot.slane %v448, 2
    %v450 = vadd.f32 %v448, %v449
    %v451 = vrot.slane %v450, 1
    %v452 = vadd.f32 %v450, %v451
    %vm455 = vcmask 1041409
    %v456 = vsel %vm455, %v452, %v445
    %vm458 = vcmask 254976
    %459 = vst.msk [vmem:[#allocation2] sm:$0x3] %vm458, %v456
    // Predicated region
    $region14: #{character_encoder_forward.1} parent=1 // pred_check
      _
    $region15: #{character_encoder_forward.1} parent=1 // pred_check_branch
      %461 = sbr.rel (0) target = $region17
    $region16: #{character_encoder_forward.1} parent=1 // pred_region
      %s463 = ssub.s32 32, 32
      %464 = vsyncadd [#allocation3], %s463
      %s466 = sshll.u32 [#allocation2], 4
      %s467 = int_to_ptr.vmem [resolvable:$true] %s466
      %469 = dma.vmem_to_hbm [thread:$0]  %s467, 32, %s3, [#allocation3]
    $region17: #{character_encoder_forward.1} parent=1 // pred_fallthru
      _
    // Predicated region
    $region18: #{character_encoder_forward.1} parent=1 // pred_check
      _
    $region19: #{character_encoder_forward.1} parent=1 // pred_check_branch
      %471 = sbr.rel (0) target = $region21
    $region20: #{character_encoder_forward.1} parent=1 // pred_region
      %472 = dma.done [#allocation3], 32
    $region21: #{character_encoder_forward.1} parent=1 // pred_fallthru
      _
    %473 = vsyncpa [#allocation3], 1

</llo_original>
